<compile_context>
chip_gen: v6e
topology: v6e:2x2x1
jax: 0.10.0
libtpu: 0.0.40
codegen_flags: <defaults>
</compile_context>

<pallas_src>
import jax
import jax.numpy as jnp
import numpy as np
from jax.experimental import pallas as pl
from jax.experimental.pallas import tpu as pltpu


def _round_up(x, m):
    return ((x + m - 1) // m) * m


def _soft_pool_kernel(batch_ref, x_ref, out_ref, acc_ref):
    # batch_ref: [1, TN]  int32 graph id per node (pad id = out-of-range => masked out)
    # x_ref:     [TN, TC] f32 node-feature tile
    # out_ref:   [Bp, TC] f32 pooled output tile (resident across the N reduction)
    # acc_ref:   [Bp, 2*TC] f32 accumulator: [:, :TC] = sum(x*w), [:, TC:] = sum(w)
    k = pl.program_id(1)

    @pl.when(k == 0)
    def _():
        acc_ref[...] = jnp.zeros_like(acc_ref)

    x = x_ref[...].astype(jnp.float32)            # [TN, TC]
    seg = batch_ref[...]                          # [1, TN] int32
    bp = acc_ref.shape[0]
    tn = seg.shape[1]

    # Build the one-hot graph-assignment mask in-kernel (no HBM one-hot).
    row_ids = jax.lax.broadcasted_iota(jnp.int32, (bp, tn), 0)
    mask = (row_ids == seg).astype(jnp.float32)   # [Bp, TN], exact 0/1

    w = jnp.exp(x)                                # EUP
    xw = x * w                                    # VPU
    packed = jnp.concatenate([xw, w], axis=1)     # [TN, 2*TC]

    # One fused MXU matmul computes both segment sums.
    acc_ref[...] += jnp.dot(mask, packed, preferred_element_type=jnp.float32)

    @pl.when(k == pl.num_programs(1) - 1)
    def _():
        tc = out_ref.shape[1]
        num = acc_ref[:, :tc]
        den = acc_ref[:, tc:]
        # (num/cnt) / (den/cnt) == num / den: the per-graph count cancels.
        out_ref[...] = (num / den).astype(out_ref.dtype)


def pool_soft_pool(x, batch, num_graphs, *, node_tile=512):
    """soft_pool: global_mean_pool(x*exp(x), batch) / global_mean_pool(exp(x), batch).

    x: [N, C] float32, batch: [N] int32 in [0, num_graphs). Returns [B, C] float32.
    """
    N, C = x.shape
    B = num_graphs

    TC = 128                                   # lane-dense feature tile
    Cp = _round_up(C, TC)
    Bp = _round_up(B, 8)                       # sublane-aligned output rows
    TN = min(node_tile, _round_up(N, 128))     # node tile (multiple of 128)
    Np = _round_up(N, TN)

    # Pad features with zeros; padded nodes get an out-of-range graph id (Bp)
    # so the in-kernel mask zeroes their contribution.
    x_p = jnp.pad(x.astype(jnp.float32), ((0, Np - N), (0, Cp - C)))
    batch_p = jnp.full((1, Np), Bp, dtype=jnp.int32)
    batch_p = batch_p.at[0, :N].set(batch.astype(jnp.int32))

    grid = (Cp // TC, Np // TN)                # (parallel feature tiles, N reduction)

    grid_spec = pltpu.PrefetchScalarGridSpec(
        num_scalar_prefetch=0,
        grid=grid,
        in_specs=[
            pl.BlockSpec((1, TN), lambda c, k: (0, k)),     # batch ids
            pl.BlockSpec((TN, TC), lambda c, k: (k, c)),    # x tile
        ],
        out_specs=pl.BlockSpec((Bp, TC), lambda c, k: (0, c)),
        scratch_shapes=[pltpu.VMEM((Bp, 2 * TC), jnp.float32)],
    )

    out = pl.pallas_call(
        _soft_pool_kernel,
        out_shape=jax.ShapeDtypeStruct((Bp, Cp), jnp.float32),
        grid_spec=grid_spec,
        compiler_params=pltpu.CompilerParams(
            dimension_semantics=("parallel", "arbitrary"),
        ),
    )(batch_p, x_p)

    return out[:B, :C]


def _reference_soft_pool(x, batch, num_graphs):
    # pure-JAX reference mirroring the PyTorch semantics
    w = jnp.exp(x)
    seg_sum_xw = jax.ops.segment_sum(x * w, batch, num_segments=num_graphs)
    seg_sum_w = jax.ops.segment_sum(w, batch, num_segments=num_graphs)
    cnt = jax.ops.segment_sum(jnp.ones((x.shape[0], 1)), batch, num_segments=num_graphs)
    return (seg_sum_xw / cnt) / (seg_sum_w / cnt)


if __name__ == "__main__":
    key = jax.random.PRNGKey(0)

    # small shapes: N=16 nodes, C=32 features, B=2 graphs (8 nodes each)
    N, C, B = 16, 32, 2
    k_x, k_sag, k_lin = jax.random.split(key, 3)

    x = jax.random.normal(k_x, (N, C), dtype=jnp.float32)
    batch = jnp.concatenate(
        [jnp.zeros(N // 2, dtype=jnp.int32), jnp.ones(N // 2, dtype=jnp.int32)]
    )

    # Deterministic parameter init mirroring __init__ (unused in soft_pool path):
    #   SAGPooling(in_channels) scoring weight ~ [C, 1], lin1: Linear(2C, C)
    sag_score_w = jax.random.normal(k_sag, (C, 1), dtype=jnp.float32) * (1.0 / np.sqrt(C))
    lin1_w = jax.random.normal(k_lin, (C, 2 * C), dtype=jnp.float32) * (1.0 / np.sqrt(2 * C))
    lin1_b = jnp.zeros((C,), dtype=jnp.float32)

    out = pool_soft_pool(x, batch, B)
    out = jax.block_until_ready(out)

    ref = _reference_soft_pool(x, batch, B)
    np.testing.assert_allclose(np.asarray(out), np.asarray(ref), rtol=1e-5, atol=1e-5)

    print("KERNEL_OK")
</pallas_src>

<mosaic_0001>
module attributes {stable_mosaic.version = 11 : i64} {
  func.func @_soft_pool_kernel(%arg0: i32, %arg1: i32, %arg2: memref<1x128xi32, #tpu.memory_space<vmem>>, %arg3: memref<128x128xf32, #tpu.memory_space<vmem>>, %arg4: memref<8x128xf32, #tpu.memory_space<vmem>>, %arg5: memref<8x256xf32, #tpu.memory_space<vmem>>) attributes {dimension_semantics = [#tpu.dimension_semantics<parallel>, #tpu.dimension_semantics<arbitrary>], iteration_bounds = array<i64: 1, 1>, scalar_prefetch = 0 : i64, scratch_operands = 1 : i64, tpu.core_type = #tpu.core_type<tc>, window_params = [{transform_indices = @transform_0, window_bounds = array<i64: 1, 128>}, {transform_indices = @transform_1, window_bounds = array<i64: 128, 128>}, {transform_indices = @transform_2, window_bounds = array<i64: 8, 128>}]} {
    %c0_i32 = arith.constant 0 : i32
    %0 = arith.cmpi eq, %arg1, %c0_i32 : i32
    %1 = arith.extui %0 : i1 to i32
    %c0_i32_0 = arith.constant 0 : i32
    %2 = arith.cmpi ne, %1, %c0_i32_0 : i32
    scf.if %2 {
      %cst_10 = arith.constant 0.000000e+00 : f32
      %20 = vector.broadcast %cst_10 : f32 to vector<8x256xf32>
      %c0_11 = arith.constant 0 : index
      %c0_12 = arith.constant 0 : index
      %21 = vector.load %arg5[%c0_11, %c0_12] : memref<8x256xf32, #tpu.memory_space<vmem>>, vector<8x256xf32>
      tpu.vector_store %arg5[%c0_11, %c0_12], %20 {strides = array<i32>} : memref<8x256xf32, #tpu.memory_space<vmem>>, vector<8x256xf32>,
    } else {
    }
    %c0 = arith.constant 0 : index
    %c0_1 = arith.constant 0 : index
    %3 = vector.load %arg3[%c0, %c0_1] : memref<128x128xf32, #tpu.memory_space<vmem>>, vector<128x128xf32>
    %c0_2 = arith.constant 0 : index
    %c0_3 = arith.constant 0 : index
    %4 = vector.load %arg2[%c0_2, %c0_3] : memref<1x128xi32, #tpu.memory_space<vmem>>, vector<1x128xi32>
    %5 = tpu.iota {dimensions = array<i32: 0>} : vector<8x128xi32>
    %6 = vector.broadcast %4 : vector<1x128xi32> to vector<8x128xi32>
    %7 = arith.cmpi eq, %5, %6 : vector<8x128xi32>
    %8 = arith.extui %7 : vector<8x128xi1> to vector<8x128xi32>
    %9 = arith.sitofp %8 : vector<8x128xi32> to vector<8x128xf32>
    %10 = math.exp %3 : vector<128x128xf32>
    %11 = arith.mulf %3, %10 : vector<128x128xf32>
    %12 = tpu.concatenate %11, %10 in 1 : vector<128x128xf32>, vector<128x128xf32> -> vector<128x256xf32>
    %c0_4 = arith.constant 0 : index
    %c0_5 = arith.constant 0 : index
    %13 = vector.load %arg5[%c0_4, %c0_5] : memref<8x256xf32, #tpu.memory_space<vmem>>, vector<8x256xf32>
    %cst = arith.constant dense<0.000000e+00> : vector<8x256xf32>
    %14 = tpu.matmul %9, %12, %cst {dimension_numbers = #tpu.dot_dimension_numbers<[1], [0], [0], [1], [0, 0, 1, 1], [], []>} : vector<8x128xf32>, vector<128x256xf32>, vector<8x256xf32> -> vector<8x256xf32>
    %15 = arith.addf %13, %14 : vector<8x256xf32>
    %c0_6 = arith.constant 0 : index
    %c0_7 = arith.constant 0 : index
    %16 = vector.load %arg5[%c0_6, %c0_7] : memref<8x256xf32, #tpu.memory_space<vmem>>, vector<8x256xf32>
    tpu.vector_store %arg5[%c0_6, %c0_7], %15 {strides = array<i32>} : memref<8x256xf32, #tpu.memory_space<vmem>>, vector<8x256xf32>,
    %c0_i32_8 = arith.constant 0 : i32
    %17 = arith.cmpi eq, %arg1, %c0_i32_8 : i32
    %18 = arith.extui %17 : i1 to i32
    %c0_i32_9 = arith.constant 0 : i32
    %19 = arith.cmpi ne, %18, %c0_i32_9 : i32
    scf.if %19 {
      %c0_10 = arith.constant 0 : index
      %c0_11 = arith.constant 0 : index
      %20 = vector.load %arg5[%c0_10, %c0_11] : memref<8x256xf32, #tpu.memory_space<vmem>>, vector<8x128xf32>
      %c0_12 = arith.constant 0 : index
      %c128 = arith.constant 128 : index
      %21 = vector.load %arg5[%c0_12, %c128] : memref<8x256xf32, #tpu.memory_space<vmem>>, vector<8x128xf32>
      %22 = arith.divf %20, %21 : vector<8x128xf32>
      %c0_13 = arith.constant 0 : index
      %c0_14 = arith.constant 0 : index
      %23 = vector.load %arg4[%c0_13, %c0_14] : memref<8x128xf32, #tpu.memory_space<vmem>>, vector<8x128xf32>
      tpu.vector_store %arg4[%c0_13, %c0_14], %22 {strides = array<i32>} : memref<8x128xf32, #tpu.memory_space<vmem>>, vector<8x128xf32>,
    } else {
    }
    return
  }
  func.func @transform_0(%arg0: i32, %arg1: i32) -> (i32, i32) {
    %c0_i32 = arith.constant 0 : i32
    %c0_i32_0 = arith.constant 0 : i32
    return %c0_i32, %arg1 : i32, i32
  }
  func.func @transform_1(%arg0: i32, %arg1: i32) -> (i32, i32) {
    %c0_i32 = arith.constant 0 : i32
    return %arg1, %arg0 : i32, i32
  }
  func.func @transform_2(%arg0: i32, %arg1: i32) -> (i32, i32) {
    %c0_i32 = arith.constant 0 : i32
    %c0_i32_0 = arith.constant 0 : i32
    return %c0_i32, %arg0 : i32, i32
  }
}

</mosaic_0001>

<llo_original>
// kernel: tpu_custom_call.1
$region0: #{tpu_custom_call.1}
  #allocation0 [shape = 'u32[]', space=smem, size = 0x4, offset = 0x4, fixed_abs, tag = 'smem constant byte address 0x4 - core index']
  #allocation1 [shape = 'u32[144,128]{1,0:T(1,128)}', space=vmem, size = 0x12000, scoped, tag = 'internal scratch']
  #allocation2 [shape = 'f32[8,256]{1,0:T(8,128)}', space=vmem, size = 0x2000, scoped, tag = 'scratch operand']
  %s0 = inlined_call_operand.hbm [shape: s32[1,128], index: 0, kind: input, shape index: {}]
  %s1 = inlined_call_operand.hbm [shape: f32[128,128], index: 1, kind: input, shape index: {}]
  %s2 = inlined_call_operand.hbm [shape: f32[8,128], index: 2, kind: output, shape index: {}]
  %s3 = sld [smem:[#allocation0]]
  $region34: #{tpu_custom_call.1} parent=0
    _
  %s5 = ssub.s32 1, %s3
  %s6 = scalar_select 0, %s5, %s3
  $region1: #{tpu_custom_call.1} parent=0
    #allocation3 [shape = 'u8[512]{0}', space=vmem, size = 0x400, scoped, tag = 'input window, operand 0, single buffered']
    #allocation4 [shape = 's32[1]{0}', space=sflag, size = 0x4, scoped, tag = 'scoped memory for tpu_custom_call.1']
    #allocation5 [shape = 's32[1]{0}', space=sflag, size = 0x4, scoped, tag = 'scoped memory for tpu_custom_call.1']
    #allocation6 [shape = 'u8[65536]{0}', space=vmem, size = 0x10000, scoped, tag = 'input window, operand 1, single buffered']
    #allocation7 [shape = 's32[1]{0}', space=sflag, size = 0x4, scoped, tag = 'scoped memory for tpu_custom_call.1']
    #allocation8 [shape = 'u8[4096]{0}', space=vmem, size = 0x1000, scoped, tag = 'output window, operand 0, single buffered']
    %7 = vsyncpa [#allocation4], 0
    %8 = vsyncpa [#allocation7], 0
    %9 = vsyncpa [#allocation5], 0
    // Predicated region
    $region2: #{tpu_custom_call.1} parent=1 // pred_check
      _
    $region3: #{tpu_custom_call.1} parent=1 // pred_check_branch
      %11 = sbr.rel (0) target = $region5
    $region4: #{tpu_custom_call.1} parent=1 // pred_region
      %s13 = ssub.s32 16, 16
      %14 = vsyncadd [#allocation4], %s13
      %s16 = sshll.u32 [#allocation3], 4
      %s17 = int_to_ptr.vmem [resolvable:$true] %s16
      %19 = dma.hbm_to_vmem [thread:$0]  %s0, 16, %s17, [#allocation4]
    $region5: #{tpu_custom_call.1} parent=1 // pred_fallthru
      _
    // Predicated region
    $region6: #{tpu_custom_call.1} parent=1 // pred_check
      _
    $region7: #{tpu_custom_call.1} parent=1 // pred_check_branch
      %21 = sbr.rel (0) target = $region9
    $region8: #{tpu_custom_call.1} parent=1 // pred_region
      %s23 = ssub.s32 2048, 2048
      %24 = vsyncadd [#allocation7], %s23
      %s25 = sshll.u32 [#allocation6], 4
      %s26 = int_to_ptr.vmem [resolvable:$true] %s25
      %31 = dma.hbm_to_vmem [thread:$0]  %s1, 2048, %s26, [#allocation7], 128, 128, 8
    $region9: #{tpu_custom_call.1} parent=1 // pred_fallthru
      _
    // Predicated region
    $region10: #{tpu_custom_call.1} parent=1 // pred_check
      _
    $region11: #{tpu_custom_call.1} parent=1 // pred_check_branch
      %33 = sbr.rel (0) target = $region13
    $region12: #{tpu_custom_call.1} parent=1 // pred_region
      %34 = dma.done [#allocation4], 16
    $region13: #{tpu_custom_call.1} parent=1 // pred_fallthru
      _
    // Predicated region
    $region14: #{tpu_custom_call.1} parent=1 // pred_check
      _
    $region15: #{tpu_custom_call.1} parent=1 // pred_check_branch
      %36 = sbr.rel (0) target = $region17
    $region16: #{tpu_custom_call.1} parent=1 // pred_region
      %37 = dma.done [#allocation7], 2048
    $region17: #{tpu_custom_call.1} parent=1 // pred_fallthru
      _
    %p38 = scmp.eq.s32.totalorder 0, 0
    // Predicated region
    $region18: #{tpu_custom_call.1} parent=1 // pred_check
      %p39 = pneg %p38
    $region19: #{tpu_custom_call.1} parent=1 // pred_check_branch
      %41 = sbr.rel (%p39) target = $region21
    $region20: #{tpu_custom_call.1} parent=1 // pred_region
      %42 = vst [vmem:[#allocation2] sm:$0xff] 0.0
      %43 = vst [vmem:[#allocation2 + $0x8] sm:$0xff] 0.0
    $region21: #{tpu_custom_call.1} parent=1 // pred_fallthru
      _
    %v44 = vld [vmem:[#allocation6] sm:$0xff]
    %v45 = vld [vmem:[#allocation6 + $0x8] sm:$0xff]
    %v46 = vld [vmem:[#allocation6 + $0x10] sm:$0xff]
    %v47 = vld [vmem:[#allocation6 + $0x18] sm:$0xff]
    %v48 = vld [vmem:[#allocation6 + $0x20] sm:$0xff]
    %v49 = vld [vmem:[#allocation6 + $0x28] sm:$0xff]
    %v50 = vld [vmem:[#allocation6 + $0x30] sm:$0xff]
    %v51 = vld [vmem:[#allocation6 + $0x38] sm:$0xff]
    %v52 = vld [vmem:[#allocation6 + $0x40] sm:$0xff]
    %v53 = vld [vmem:[#allocation6 + $0x48] sm:$0xff]
    %v54 = vld [vmem:[#allocation6 + $0x50] sm:$0xff]
    %v55 = vld [vmem:[#allocation6 + $0x58] sm:$0xff]
    %v56 = vld [vmem:[#allocation6 + $0x60] sm:$0xff]
    %v57 = vld [vmem:[#allocation6 + $0x68] sm:$0xff]
    %v58 = vld [vmem:[#allocation6 + $0x70] sm:$0xff]
    %v59 = vld [vmem:[#allocation6 + $0x78] sm:$0xff]
    %v60 = vld [vmem:[#allocation3] sm:$0x1]
    %v61 = vlaneseq
    %v62 = vshrl.u32 %v61, 7
    %v63 = vlaneseq
    %v64 = vshrl.u32 %v63, 7
    %v65 = vsub.s32 0, %v64
    %v66 = vrot.slane %v60, %v65
    %vm67 = vcmp.eq.s32.totalorder %v62, %v66
    %v68 = vsel %vm67, 1, 0
    %v69 = vcvt.s32.f32 %v68
    %v70 = vmul.f32 %v44, 1.442695
    %v71 = vpow.pop %v70
    %v72 = vmul.f32 %v45, 1.442695
    %v73 = vpow.pop %v72
    %v74 = vmul.f32 %v46, 1.442695
    %v75 = vpow.pop %v74
    %v76 = vmul.f32 %v47, 1.442695
    %v77 = vpow.pop %v76
    %v78 = vmul.f32 %v48, 1.442695
    %v79 = vpow.pop %v78
    %v80 = vmul.f32 %v49, 1.442695
    %v81 = vpow.pop %v80
    %v82 = vmul.f32 %v50, 1.442695
    %v83 = vpow.pop %v82
    %v84 = vmul.f32 %v51, 1.442695
    %v85 = vpow.pop %v84
    %v86 = vmul.f32 %v52, 1.442695
    %v87 = vpow.pop %v86
    %v88 = vmul.f32 %v53, 1.442695
    %v89 = vpow.pop %v88
    %v90 = vmul.f32 %v54, 1.442695
    %v91 = vpow.pop %v90
    %v92 = vmul.f32 %v55, 1.442695
    %v93 = vpow.pop %v92
    %v94 = vmul.f32 %v56, 1.442695
    %v95 = vpow.pop %v94
    %v96 = vmul.f32 %v57, 1.442695
    %v97 = vpow.pop %v96
    %v98 = vmul.f32 %v58, 1.442695
    %v99 = vpow.pop %v98
    %v100 = vmul.f32 %v59, 1.442695
    %v101 = vpow.pop %v100
    %v102 = vmul.f32 %v44, %v71
    %v103 = vmul.f32 %v45, %v73
    %v104 = vmul.f32 %v46, %v75
    %v105 = vmul.f32 %v47, %v77
    %v106 = vmul.f32 %v48, %v79
    %v107 = vmul.f32 %v49, %v81
    %v108 = vmul.f32 %v50, %v83
    %v109 = vmul.f32 %v51, %v85
    %v110 = vmul.f32 %v52, %v87
    %v111 = vmul.f32 %v53, %v89
    %v112 = vmul.f32 %v54, %v91
    %v113 = vmul.f32 %v55, %v93
    %v114 = vmul.f32 %v56, %v95
    %v115 = vmul.f32 %v57, %v97
    %v116 = vmul.f32 %v58, %v99
    %v117 = vmul.f32 %v59, %v101
    %v118 = vld [vmem:[#allocation2] sm:$0xff]
    %v119 = vld [vmem:[#allocation2 + $0x8] sm:$0xff]
    %120 = vmatprep.subr.mxu0 %v101
    %121 = vmatpush1.msra.mxu0 %v117
    %122 = vmatprep.subr.mxu0 %v99
    %123 = vmatpush1.msra.mxu0 %v116
    %124 = vmatprep.subr.mxu0 %v97
    %125 = vmatpush1.msra.mxu0 %v115
    %126 = vmatprep.subr.mxu0 %v95
    %127 = vmatpush1.msra.mxu0 %v114
    %128 = vmatprep.subr.mxu0 %v93
    %129 = vmatpush1.msra.mxu0 %v113
    %130 = vmatprep.subr.mxu0 %v91
    %131 = vmatpush1.msra.mxu0 %v112
    %132 = vmatprep.subr.mxu0 %v89
    %133 = vmatpush1.msra.mxu0 %v111
    %134 = vmatprep.subr.mxu0 %v87
    %135 = vmatpush1.msra.mxu0 %v110
    %136 = vmatprep.subr.mxu0 %v85
    %137 = vmatpush1.msra.mxu0 %v109
    %138 = vmatprep.subr.mxu0 %v83
    %139 = vmatpush1.msra.mxu0 %v108
    %140 = vmatprep.subr.mxu0 %v81
    %141 = vmatpush1.msra.mxu0 %v107
    %142 = vmatprep.subr.mxu0 %v79
    %143 = vmatpush1.msra.mxu0 %v106
    %144 = vmatprep.subr.mxu0 %v77
    %145 = vmatpush1.msra.mxu0 %v105
    %146 = vmatprep.subr.mxu0 %v75
    %147 = vmatpush1.msra.mxu0 %v104
    %148 = vmatprep.subr.mxu0 %v73
    %149 = vmatpush1.msra.mxu0 %v103
    %150 = vmatprep.subr.mxu0 %v71
    %151 = vmatpush1.msra.mxu0 %v102
    %152 = vmatprep.subr.mxu0 0.0
    %153 = vmatpush2.msra.mxu0 0.0
    %154 = vmatprep.subr.mxu0 0.0
    %155 = vmatpush2.msra.mxu0 0.0
    %156 = vmatprep.subr.mxu0 0.0
    %157 = vmatpush2.msra.mxu0 0.0
    %158 = vmatprep.subr.mxu0 0.0
    %159 = vmatpush2.msra.mxu0 0.0
    %160 = vmatprep.subr.mxu0 0.0
    %161 = vmatpush2.msra.mxu0 0.0
    %162 = vmatprep.subr.mxu0 0.0
    %163 = vmatpush2.msra.mxu0 0.0
    %164 = vmatprep.subr.mxu0 0.0
    %165 = vmatpush2.msra.mxu0 0.0
    %166 = vmatprep.subr.mxu0 0.0
    %167 = vmatpush2.msra.mxu0 0.0
    %168 = vmatprep.subr.mxu0 0.0
    %169 = vmatpush2.msra.mxu0 0.0
    %170 = vmatprep.subr.mxu0 0.0
    %171 = vmatpush2.msra.mxu0 0.0
    %172 = vmatprep.subr.mxu0 0.0
    %173 = vmatpush2.msra.mxu0 0.0
    %174 = vmatprep.subr.mxu0 0.0
    %175 = vmatpush2.msra.mxu0 0.0
    %176 = vmatprep.subr.mxu0 0.0
    %177 = vmatpush2.msra.mxu0 0.0
    %178 = vmatprep.subr.mxu0 0.0
    %179 = vmatpush2.msra.mxu0 0.0
    %180 = vmatprep.subr.mxu0 0.0
    %181 = vmatpush2.msra.mxu0 0.0
    %182 = vmatprep.subr.mxu0 0.0
    %183 = vmatpush2.msra.mxu0 0.0
    %184 = vmatprep.mubr.f32.mxu0 0.0
    %185 = vmatmul.mubr.f32.gmra.mxu0 %v69
    %v186 = vpop.f32.mrf.mxu0
    %v187 = vadd.f32 0.0, %v186
    %v188 = vpop.f32.mrf.mxu0
    %v189 = vadd.f32 0.0, %v188
    %190 = vdwg.mxu0
    %v191 = vadd.f32 %v118, %v187
    %v192 = vadd.f32 %v119, %v189
    %193 = vst [vmem:[#allocation2] sm:$0xff] %v191
    %194 = vst [vmem:[#allocation2 + $0x8] sm:$0xff] %v192
    // Predicated region
    $region22: #{tpu_custom_call.1} parent=1 // pred_check
      %p195 = pneg %p38
    $region23: #{tpu_custom_call.1} parent=1 // pred_check_branch
      %197 = sbr.rel (%p195) target = $region25
    $region24: #{tpu_custom_call.1} parent=1 // pred_region
      %v198 = vld [vmem:[#allocation2] sm:$0xff]
      %v199 = vld [vmem:[#allocation2 + $0x8] sm:$0xff]
      %v200 = vrcp.pop %v199
      %v201 = vmul.f32 %v198, %v200
      %202 = vst [vmem:[#allocation8] sm:$0xff] %v201
    $region25: #{tpu_custom_call.1} parent=1 // pred_fallthru
      _
    // Predicated region
    $region26: #{tpu_custom_call.1} parent=1 // pred_check
      _
    $region27: #{tpu_custom_call.1} parent=1 // pred_check_branch
      %204 = sbr.rel (0) target = $region29
    $region28: #{tpu_custom_call.1} parent=1 // pred_region
      %s206 = ssub.s32 128, 128
      %207 = vsyncadd [#allocation5], %s206
      %s209 = sshll.u32 [#allocation8], 4
      %s210 = int_to_ptr.vmem [resolvable:$true] %s209
      %212 = dma.vmem_to_hbm [thread:$0]  %s210, 128, %s2, [#allocation5]
    $region29: #{tpu_custom_call.1} parent=1 // pred_fallthru
      _
    // Predicated region
    $region30: #{tpu_custom_call.1} parent=1 // pred_check
      _
    $region31: #{tpu_custom_call.1} parent=1 // pred_check_branch
      %214 = sbr.rel (0) target = $region33
    $region32: #{tpu_custom_call.1} parent=1 // pred_region
      %215 = dma.done [#allocation5], 128
    $region33: #{tpu_custom_call.1} parent=1 // pred_fallthru
      _
    %216 = vsyncpa [#allocation4], 1
    %217 = vsyncpa [#allocation7], 1
    %218 = vsyncpa [#allocation5], 1

</llo_original>
